<compile_context>
chip_gen: v7x
topology: tpu7x:2x2x1
jax: 0.10.0
libtpu: 0.0.40
codegen_flags: <defaults>
</compile_context>

<pallas_src>
import functools

import jax
import jax.numpy as jnp
from jax.experimental import pallas as pl
from jax.experimental.pallas import tpu as pltpu


def _round_up(x, m):
    return (x + m - 1) // m * m


def _pad2(a, rows, cols):
    return jnp.pad(a, ((0, rows - a.shape[0]), (0, cols - a.shape[1])))


def _choose_tile(dim, granule, max_tile):
    """Return (padded_dim, tile) with tile | padded_dim and tile % granule == 0."""
    dp = _round_up(dim, granule)
    if dp <= max_tile:
        return dp, dp
    return _round_up(dim, max_tile), max_tile


# ---------------------------------------------------------------------------
# Fused whole-MLP kernel: weights resident in VMEM, activations never hit HBM.
# ---------------------------------------------------------------------------
def _fused_mlp_kernel(x_ref, wh_ref, bh_ref, wf_ref, bf_ref, o_ref, *,
                      num_hidden, compute_dtype):
    h = x_ref[...]                                        # (tb, Dp) float32
    for i in range(num_hidden):                           # static unroll over layers
        y = jnp.dot(h.astype(compute_dtype), wh_ref[i],   # bf16 x bf16 -> f32 acc (MXU)
                    preferred_element_type=jnp.float32)
        y = y + bh_ref[i]                                 # f32 bias add (epilogue in f32)
        h = jnp.maximum(y, 0.0)                           # ReLU
        # Dropout: eval-mode identity.
    y = jnp.dot(h.astype(compute_dtype), wf_ref[...],
                preferred_element_type=jnp.float32)
    y = y + bf_ref[...]
    o_ref[...] = y.astype(o_ref.dtype)


def mlp_forward_fused(x, params, *, compute_dtype=jnp.bfloat16):
    hidden = params[:-1]
    wf, bf = params[-1]
    B, D = x.shape
    C = wf.shape[1]
    L = len(hidden)
    assert L >= 1

    Dp = _round_up(D, 128)                 # lane-dense feature dim
    Cp = _round_up(C, 128)                 # lane-dense class dim
    tb = min(256, _round_up(B, 8))         # batch tile (sublane granule)
    Bp = _round_up(B, tb)

    x_p = _pad2(x, Bp, Dp)
    wh = jnp.stack([_pad2(w, Dp, Dp) for (w, _) in hidden]).astype(compute_dtype)
    bh = jnp.stack([_pad2(b.reshape(1, -1), 1, Dp) for (_, b) in hidden])   # f32
    wf_p = _pad2(wf, Dp, Cp).astype(compute_dtype)
    bf_p = _pad2(bf.reshape(1, -1), 1, Cp)                                  # f32

    flops = 2 * Bp * Dp * (L * Dp + Cp)
    bytes_accessed = (x_p.size * 4 + wh.size * wh.dtype.itemsize + bh.size * 4 +
                      wf_p.size * wf_p.dtype.itemsize + bf_p.size * 4 + Bp * Cp * 4)

    kernel = functools.partial(_fused_mlp_kernel, num_hidden=L,
                               compute_dtype=compute_dtype)
    out = pl.pallas_call(
        kernel,
        out_shape=jax.ShapeDtypeStruct((Bp, Cp), x.dtype),
        grid_spec=pltpu.PrefetchScalarGridSpec(
            num_scalar_prefetch=0,
            grid=(Bp // tb,),
            in_specs=[
                pl.BlockSpec((tb, Dp), lambda i: (i, 0)),       # activations: tiled over batch
                pl.BlockSpec((L, Dp, Dp), lambda i: (0, 0, 0)),  # stacked hidden weights (resident)
                pl.BlockSpec((L, 1, Dp), lambda i: (0, 0, 0)),   # stacked hidden biases
                pl.BlockSpec((Dp, Cp), lambda i: (0, 0)),        # final weight
                pl.BlockSpec((1, Cp), lambda i: (0, 0)),         # final bias
            ],
            out_specs=pl.BlockSpec((tb, Cp), lambda i: (i, 0)),
        ),
        compiler_params=pltpu.CompilerParams(
            dimension_semantics=("parallel",),
            vmem_limit_bytes=32 * 1024 * 1024,
        ),
        cost_estimate=pl.CostEstimate(flops=flops, transcendentals=0,
                                      bytes_accessed=bytes_accessed),
    )(x_p, wh, bh, wf_p, bf_p)
    return out[:B, :C]


# ---------------------------------------------------------------------------
# Fallback: per-layer tiled matmul (3-D grid, f32 accumulator, fused epilogue).
# ---------------------------------------------------------------------------
def _tiled_linear_kernel(x_ref, w_ref, b_ref, o_ref, acc_ref, *,
                         apply_relu, compute_dtype):
    k = pl.program_id(2)

    @pl.when(k == 0)
    def _():
        acc_ref[...] = jnp.zeros_like(acc_ref)

    acc_ref[...] += jnp.dot(x_ref[...].astype(compute_dtype), w_ref[...],
                            preferred_element_type=jnp.float32)

    @pl.when(k == pl.num_programs(2) - 1)
    def _():
        y = acc_ref[...] + b_ref[...]          # bias + ReLU only once, in f32
        if apply_relu:
            y = jnp.maximum(y, 0.0)
        o_ref[...] = y.astype(o_ref.dtype)


def pallas_linear_tiled(x, w, b, *, apply_relu, compute_dtype=jnp.bfloat16):
    """x: (M, K), w: (K, N), b: (N,) -> (M, N).  y = x @ w + b (+ ReLU)."""
    M, K = x.shape
    Kw, N = w.shape
    assert K == Kw

    Mp, tm = _choose_tile(M, 8, 256)
    Np, tn = _choose_tile(N, 128, 256)
    Kp, tk = _choose_tile(K, 128, 512)

    x_p = _pad2(x, Mp, Kp)
    w_p = _pad2(w, Kp, Np).astype(compute_dtype)
    b_p = _pad2(b.reshape(1, -1), 1, Np)

    grid = (Mp // tm, Np // tn, Kp // tk)   # K (reduction) is the last grid axis
    kernel = functools.partial(_tiled_linear_kernel, apply_relu=apply_relu,
                               compute_dtype=compute_dtype)
    out = pl.pallas_call(
        kernel,
        out_shape=jax.ShapeDtypeStruct((Mp, Np), x.dtype),
        grid_spec=pltpu.PrefetchScalarGridSpec(
            num_scalar_prefetch=0,
            grid=grid,
            in_specs=[
                pl.BlockSpec((tm, tk), lambda i, j, k: (i, k)),
                pl.BlockSpec((tk, tn), lambda i, j, k: (k, j)),
                pl.BlockSpec((1, tn), lambda i, j, k: (0, j)),
            ],
            out_specs=pl.BlockSpec((tm, tn), lambda i, j, k: (i, j)),
            scratch_shapes=[pltpu.VMEM((tm, tn), jnp.float32)],
        ),
        compiler_params=pltpu.CompilerParams(
            dimension_semantics=("parallel", "parallel", "arbitrary"),
            vmem_limit_bytes=32 * 1024 * 1024,
        ),
        cost_estimate=pl.CostEstimate(
            flops=2 * Mp * Kp * Np, transcendentals=0,
            bytes_accessed=(x_p.size * 4 + w_p.size * w_p.dtype.itemsize +
                            b_p.size * 4 + Mp * Np * 4)),
    )(x_p, w_p, b_p)
    return out[:M, :N]


# ---------------------------------------------------------------------------
# Model wrapper
# ---------------------------------------------------------------------------
def init_mlp_params(key, num_layers, dim_input, num_classes, dtype=jnp.float32):
    """Deterministic synthetic params. Weights stored as (in, out) == PyTorch W.T."""
    params = []
    scale = 1.0 / jnp.sqrt(dim_input)
    for _ in range(num_layers - 1):
        key, kw, kb = jax.random.split(key, 3)
        w = jax.random.uniform(kw, (dim_input, dim_input), dtype, -scale, scale)
        b = jax.random.uniform(kb, (dim_input,), dtype, -scale, scale)
        params.append((w, b))
    key, kw, kb = jax.random.split(key, 3)
    w = jax.random.uniform(kw, (dim_input, num_classes), dtype, -scale, scale)
    b = jax.random.uniform(kb, (num_classes,), dtype, -scale, scale)
    params.append((w, b))
    return params


def mlp_forward(x, params, *, compute_dtype=jnp.bfloat16, fuse=None):
    """Hidden layers: Linear -> ReLU -> Dropout(eval: identity); head: Linear."""
    num_hidden = len(params) - 1
    if fuse is None:
        D = x.shape[1]
        same_shape = all(w.shape == (D, D) for (w, _) in params[:-1])
        itemsize = jnp.dtype(compute_dtype).itemsize
        Dp = _round_up(D, 128)
        Cp = _round_up(params[-1][0].shape[1], 128)
        # Double-buffered resident weights must fit comfortably in scoped VMEM
        # on every chip generation (v5e 16 MiB default .. v7x 64 MiB physical).
        weight_bytes = ((num_hidden * Dp * Dp + Dp * Cp) * itemsize +
                        (num_hidden * Dp + Cp) * 4)
        fuse = num_hidden >= 1 and same_shape and 2 * weight_bytes <= 20 * 1024 * 1024
    if fuse:
        return mlp_forward_fused(x, params, compute_dtype=compute_dtype)
    h = x
    for (w, b) in params[:-1]:
        h = pallas_linear_tiled(h, w, b, apply_relu=True,
                                compute_dtype=compute_dtype)
        # Dropout: eval-mode identity.
    w, b = params[-1]
    return pallas_linear_tiled(h, w, b, apply_relu=False,
                               compute_dtype=compute_dtype)


if __name__ == "__main__":
    num_layers = 3
    dim_input = 32
    num_classes = 8
    batch = 8

    key = jax.random.PRNGKey(0)
    key, kx = jax.random.split(key)
    x = jax.random.normal(kx, (batch, dim_input), jnp.float32)
    params = init_mlp_params(key, num_layers, dim_input, num_classes)

    # Fused whole-MLP kernel (default path for small models).
    out = mlp_forward(x, params)
    jax.block_until_ready(out)

    # Also exercise the per-layer tiled fallback path.
    out_tiled = mlp_forward(x, params, fuse=False)
    jax.block_until_ready(out_tiled)

    # Reference with the same numerics (bf16 matmul inputs, f32 accumulation).
    def ref_forward(xv, ps, cd=jnp.bfloat16):
        h = xv
        for (w, b) in ps[:-1]:
            h = jnp.maximum(jnp.dot(h.astype(cd), w.astype(cd),
                                    preferred_element_type=jnp.float32) + b, 0.0)
        w, b = ps[-1]
        return jnp.dot(h.astype(cd), w.astype(cd),
                       preferred_element_type=jnp.float32) + b

    ref = ref_forward(x, params)
    assert out.shape == (batch, num_classes)
    assert out_tiled.shape == (batch, num_classes)
    assert jnp.allclose(out, ref, atol=5e-2, rtol=5e-2)
    assert jnp.allclose(out_tiled, ref, atol=5e-2, rtol=5e-2)

    print("KERNEL_OK")
</pallas_src>

<mosaic_0001>
module attributes {stable_mosaic.version = 11 : i64} {
  func.func @_fused_mlp_kernel(%arg0: i32, %arg1: memref<8x128xf32, #tpu.memory_space<vmem>>, %arg2: memref<2x128x128xbf16, #tpu.memory_space<vmem>>, %arg3: memref<2x1x128xf32, #tpu.memory_space<vmem>>, %arg4: memref<128x128xbf16, #tpu.memory_space<vmem>>, %arg5: memref<1x128xf32, #tpu.memory_space<vmem>>, %arg6: memref<8x128xf32, #tpu.memory_space<vmem>>) attributes {dimension_semantics = [#tpu.dimension_semantics<parallel>], iteration_bounds = array<i64: 1>, scalar_prefetch = 0 : i64, scratch_operands = 0 : i64, tpu.core_type = #tpu.core_type<tc>, window_params = [{transform_indices = @transform_0, window_bounds = array<i64: 8, 128>}, {pipeline_mode = #tpu.pipeline_mode<synchronous>, transform_indices = @transform_1, window_bounds = array<i64: 2, 128, 128>}, {pipeline_mode = #tpu.pipeline_mode<synchronous>, transform_indices = @transform_2, window_bounds = array<i64: 2, 1, 128>}, {pipeline_mode = #tpu.pipeline_mode<synchronous>, transform_indices = @transform_3, window_bounds = array<i64: 128, 128>}, {pipeline_mode = #tpu.pipeline_mode<synchronous>, transform_indices = @transform_4, window_bounds = array<i64: 1, 128>}, {transform_indices = @transform_5, window_bounds = array<i64: 8, 128>}]} {
    %c0 = arith.constant 0 : index
    %c0_0 = arith.constant 0 : index
    %0 = vector.load %arg1[%c0, %c0_0] : memref<8x128xf32, #tpu.memory_space<vmem>>, vector<8x128xf32>
    %1 = arith.truncf %0 : vector<8x128xf32> to vector<8x128xbf16>
    %c0_1 = arith.constant 0 : index
    %c0_2 = arith.constant 0 : index
    %c0_3 = arith.constant 0 : index
    %2 = vector.load %arg2[%c0_1, %c0_2, %c0_3] : memref<2x128x128xbf16, #tpu.memory_space<vmem>>, vector<1x128x128xbf16>
    %3 = vector.shape_cast %2 : vector<1x128x128xbf16> to vector<128x128xbf16>
    %cst = arith.constant dense<0.000000e+00> : vector<8x128xf32>
    %4 = tpu.matmul %1, %3, %cst {dimension_numbers = #tpu.dot_dimension_numbers<[1], [0], [0], [1], [0, 0, 1, 1], [], []>} : vector<8x128xbf16>, vector<128x128xbf16>, vector<8x128xf32> -> vector<8x128xf32>
    %c0_4 = arith.constant 0 : index
    %c0_5 = arith.constant 0 : index
    %c0_6 = arith.constant 0 : index
    %5 = vector.load %arg3[%c0_4, %c0_5, %c0_6] : memref<2x1x128xf32, #tpu.memory_space<vmem>>, vector<1x1x128xf32>
    %6 = vector.shape_cast %5 : vector<1x1x128xf32> to vector<1x128xf32>
    %7 = vector.broadcast %6 : vector<1x128xf32> to vector<8x128xf32>
    %8 = arith.addf %4, %7 : vector<8x128xf32>
    %cst_7 = arith.constant 0.000000e+00 : f32
    %9 = vector.broadcast %cst_7 : f32 to vector<8x128xf32>
    %10 = arith.maximumf %8, %9 : vector<8x128xf32>
    %11 = arith.truncf %10 : vector<8x128xf32> to vector<8x128xbf16>
    %c1 = arith.constant 1 : index
    %c0_8 = arith.constant 0 : index
    %c0_9 = arith.constant 0 : index
    %12 = vector.load %arg2[%c1, %c0_8, %c0_9] : memref<2x128x128xbf16, #tpu.memory_space<vmem>>, vector<1x128x128xbf16>
    %13 = vector.shape_cast %12 : vector<1x128x128xbf16> to vector<128x128xbf16>
    %cst_10 = arith.constant dense<0.000000e+00> : vector<8x128xf32>
    %14 = tpu.matmul %11, %13, %cst_10 {dimension_numbers = #tpu.dot_dimension_numbers<[1], [0], [0], [1], [0, 0, 1, 1], [], []>} : vector<8x128xbf16>, vector<128x128xbf16>, vector<8x128xf32> -> vector<8x128xf32>
    %c1_11 = arith.constant 1 : index
    %c0_12 = arith.constant 0 : index
    %c0_13 = arith.constant 0 : index
    %15 = vector.load %arg3[%c1_11, %c0_12, %c0_13] : memref<2x1x128xf32, #tpu.memory_space<vmem>>, vector<1x1x128xf32>
    %16 = vector.shape_cast %15 : vector<1x1x128xf32> to vector<1x128xf32>
    %17 = vector.broadcast %16 : vector<1x128xf32> to vector<8x128xf32>
    %18 = arith.addf %14, %17 : vector<8x128xf32>
    %cst_14 = arith.constant 0.000000e+00 : f32
    %19 = vector.broadcast %cst_14 : f32 to vector<8x128xf32>
    %20 = arith.maximumf %18, %19 : vector<8x128xf32>
    %21 = arith.truncf %20 : vector<8x128xf32> to vector<8x128xbf16>
    %c0_15 = arith.constant 0 : index
    %c0_16 = arith.constant 0 : index
    %22 = vector.load %arg4[%c0_15, %c0_16] : memref<128x128xbf16, #tpu.memory_space<vmem>>, vector<128x128xbf16>
    %cst_17 = arith.constant dense<0.000000e+00> : vector<8x128xf32>
    %23 = tpu.matmul %21, %22, %cst_17 {dimension_numbers = #tpu.dot_dimension_numbers<[1], [0], [0], [1], [0, 0, 1, 1], [], []>} : vector<8x128xbf16>, vector<128x128xbf16>, vector<8x128xf32> -> vector<8x128xf32>
    %c0_18 = arith.constant 0 : index
    %c0_19 = arith.constant 0 : index
    %24 = vector.load %arg5[%c0_18, %c0_19] : memref<1x128xf32, #tpu.memory_space<vmem>>, vector<1x128xf32>
    %25 = vector.broadcast %24 : vector<1x128xf32> to vector<8x128xf32>
    %26 = arith.addf %23, %25 : vector<8x128xf32>
    %c0_20 = arith.constant 0 : index
    %c0_21 = arith.constant 0 : index
    %27 = vector.load %arg6[%c0_20, %c0_21] : memref<8x128xf32, #tpu.memory_space<vmem>>, vector<8x128xf32>
    tpu.vector_store %arg6[%c0_20, %c0_21], %26 {strides = array<i32>} : memref<8x128xf32, #tpu.memory_space<vmem>>, vector<8x128xf32>,
    return
  }
  func.func @transform_0(%arg0: i32) -> (i32, i32) {
    %c0_i32 = arith.constant 0 : i32
    %c0_i32_0 = arith.constant 0 : i32
    return %arg0, %c0_i32 : i32, i32
  }
  func.func @transform_1(%arg0: i32) -> (i32, i32, i32) {
    %c0_i32 = arith.constant 0 : i32
    %c0_i32_0 = arith.constant 0 : i32
    %c0_i32_1 = arith.constant 0 : i32
    %c0_i32_2 = arith.constant 0 : i32
    return %c0_i32, %c0_i32_0, %c0_i32_1 : i32, i32, i32
  }
  func.func @transform_2(%arg0: i32) -> (i32, i32, i32) {
    %c0_i32 = arith.constant 0 : i32
    %c0_i32_0 = arith.constant 0 : i32
    %c0_i32_1 = arith.constant 0 : i32
    %c0_i32_2 = arith.constant 0 : i32
    return %c0_i32, %c0_i32_0, %c0_i32_1 : i32, i32, i32
  }
  func.func @transform_3(%arg0: i32) -> (i32, i32) {
    %c0_i32 = arith.constant 0 : i32
    %c0_i32_0 = arith.constant 0 : i32
    %c0_i32_1 = arith.constant 0 : i32
    return %c0_i32, %c0_i32_0 : i32, i32
  }
  func.func @transform_4(%arg0: i32) -> (i32, i32) {
    %c0_i32 = arith.constant 0 : i32
    %c0_i32_0 = arith.constant 0 : i32
    %c0_i32_1 = arith.constant 0 : i32
    return %c0_i32, %c0_i32_0 : i32, i32
  }
  func.func @transform_5(%arg0: i32) -> (i32, i32) {
    %c0_i32 = arith.constant 0 : i32
    %c0_i32_0 = arith.constant 0 : i32
    return %arg0, %c0_i32 : i32, i32
  }
}

</mosaic_0001>

<llo_original>
// kernel: tpu_custom_call.1
$region0: #{tpu_custom_call.1}
  #allocation0 [shape = 'u32[]', space=smem, size = 0x4, offset = 0x4, fixed_abs, tag = 'smem constant byte address 0x4 - core index']
  #allocation1 [shape = 'u32[144,128]{1,0:T(1,128)}', space=vmem, size = 0x12000, scoped, tag = 'internal scratch']
  %s0 = inlined_call_operand.hbm [shape: f32[8,128], index: 0, kind: input, shape index: {}]
  %s1 = inlined_call_operand.hbm [shape: bf16[2,128,128], index: 1, kind: input, shape index: {}]
  %s2 = inlined_call_operand.vmem [shape: f32[2,1,128], index: 2, kind: input, shape index: {}]
  %s3 = inlined_call_operand.hbm [shape: bf16[128,128], index: 3, kind: input, shape index: {}]
  %s4 = inlined_call_operand.vmem [shape: f32[1,128], index: 4, kind: input, shape index: {}]
  %s5 = inlined_call_operand.hbm [shape: f32[8,128], index: 5, kind: output, shape index: {}]
  %s6 = sld [smem:[#allocation0]]
  $region42: #{tpu_custom_call.1} parent=0
    _
  %s8 = ssub.s32 1, %s6
  %s9 = scalar_select 0, %s8, %s6
  $region1: #{tpu_custom_call.1} parent=0
    #allocation2 [shape = 'u8[4096]{0}', space=vmem, size = 0x1000, scoped, tag = 'input window, operand 0, single buffered']
    #allocation3 [shape = 's32[1]{0}', space=sflag, size = 0x4, scoped, tag = 'scoped memory for tpu_custom_call.1']
    #allocation4 [shape = 's32[1]{0}', space=sflag, size = 0x4, scoped, tag = 'scoped memory for tpu_custom_call.1']
    #allocation5 [shape = 'u8[65536]{0}', space=vmem, size = 0x10000, scoped, tag = 'input window, operand 1, single buffered']
    #allocation6 [shape = 's32[1]{0}', space=sflag, size = 0x4, scoped, tag = 'scoped memory for tpu_custom_call.1']
    #allocation7 [shape = 'u8[32768]{0}', space=vmem, size = 0x8000, scoped, tag = 'input window, operand 3, single buffered']
    #allocation8 [shape = 'u8[4096]{0}', space=vmem, size = 0x1000, scoped, tag = 'output window, operand 0, single buffered']
    %10 = vsyncpa [#allocation3], 0
    %11 = vsyncpa [#allocation6], 0
    %12 = vsyncpa [#allocation4], 0
    // Predicated region
    $region2: #{tpu_custom_call.1} parent=1 // pred_check
      _
    $region3: #{tpu_custom_call.1} parent=1 // pred_check_branch
      %14 = sbr.rel (0) target = $region5
    $region4: #{tpu_custom_call.1} parent=1 // pred_region
      %s16 = ssub.s32 128, 128
      %17 = vsyncadd [#allocation3], %s16
      %s19 = sshll.u32 [#allocation2], 4
      %s20 = int_to_ptr.vmem [resolvable:$true] %s19
      %22 = dma.hbm_to_vmem [thread:$0]  %s0, 128, %s20, [#allocation3]
    $region5: #{tpu_custom_call.1} parent=1 // pred_fallthru
      _
    // Predicated region
    $region6: #{tpu_custom_call.1} parent=1 // pred_check
      _
    $region7: #{tpu_custom_call.1} parent=1 // pred_check_branch
      %24 = sbr.rel (0) target = $region9
    $region8: #{tpu_custom_call.1} parent=1 // pred_region
      %s26 = ssub.s32 2048, 2048
      %27 = vsyncadd [#allocation6], %s26
      %s28 = sshll.u32 [#allocation5], 4
      %s29 = int_to_ptr.vmem [resolvable:$true] %s28
      %34 = dma.hbm_to_vmem [thread:$0]  %s1, 2048, %s29, [#allocation6], 64, 64, 4
    $region9: #{tpu_custom_call.1} parent=1 // pred_fallthru
      _
    // Predicated region
    $region10: #{tpu_custom_call.1} parent=1 // pred_check
      _
    $region11: #{tpu_custom_call.1} parent=1 // pred_check_branch
      %36 = sbr.rel (0) target = $region13
    $region12: #{tpu_custom_call.1} parent=1 // pred_region
      _
    $region13: #{tpu_custom_call.1} parent=1 // pred_fallthru
      _
    // Predicated region
    $region14: #{tpu_custom_call.1} parent=1 // pred_check
      _
    $region15: #{tpu_custom_call.1} parent=1 // pred_check_branch
      %38 = sbr.rel (0) target = $region17
    $region16: #{tpu_custom_call.1} parent=1 // pred_region
      %s40 = ssub.s32 1024, 1024
      %41 = vsyncadd [#allocation6], %s40
      %s42 = sshll.u32 [#allocation7], 4
      %s43 = int_to_ptr.vmem [resolvable:$true] %s42
      %48 = dma.hbm_to_vmem [thread:$0]  %s3, 1024, %s43, [#allocation6], 64, 64, 4
    $region17: #{tpu_custom_call.1} parent=1 // pred_fallthru
      _
    // Predicated region
    $region18: #{tpu_custom_call.1} parent=1 // pred_check
      _
    $region19: #{tpu_custom_call.1} parent=1 // pred_check_branch
      %50 = sbr.rel (0) target = $region21
    $region20: #{tpu_custom_call.1} parent=1 // pred_region
      _
    $region21: #{tpu_custom_call.1} parent=1 // pred_fallthru
      _
    // Predicated region
    $region22: #{tpu_custom_call.1} parent=1 // pred_check
      _
    $region23: #{tpu_custom_call.1} parent=1 // pred_check_branch
      %52 = sbr.rel (0) target = $region25
    $region24: #{tpu_custom_call.1} parent=1 // pred_region
      %53 = dma.done [#allocation3], 128
    $region25: #{tpu_custom_call.1} parent=1 // pred_fallthru
      _
    // Predicated region
    $region26: #{tpu_custom_call.1} parent=1 // pred_check
      _
    $region27: #{tpu_custom_call.1} parent=1 // pred_check_branch
      %55 = sbr.rel (0) target = $region29
    $region28: #{tpu_custom_call.1} parent=1 // pred_region
      %56 = dma.done [#allocation6], 2048
    $region29: #{tpu_custom_call.1} parent=1 // pred_fallthru
      _
    // Predicated region
    $region30: #{tpu_custom_call.1} parent=1 // pred_check
      _
    $region31: #{tpu_custom_call.1} parent=1 // pred_check_branch
      %58 = sbr.rel (0) target = $region33
    $region32: #{tpu_custom_call.1} parent=1 // pred_region
      %59 = dma.done [#allocation6], 1024
    $region33: #{tpu_custom_call.1} parent=1 // pred_fallthru
      _
    %v61 = vld [vmem:[#allocation2] sm:$0xff]
    %v62 = vpack.c.bf16 %v61, %v61
    %v63 = vld [vmem:[#allocation5] sm:$0xf]
    %v64 = vld [vmem:[#allocation5 + $0x4] sm:$0xf]
    %v65 = vld [vmem:[#allocation5 + $0x8] sm:$0xf]
    %v66 = vld [vmem:[#allocation5 + $0xc] sm:$0xf]
    %v67 = vld [vmem:[#allocation5 + $0x10] sm:$0xf]
    %v68 = vld [vmem:[#allocation5 + $0x14] sm:$0xf]
    %v69 = vld [vmem:[#allocation5 + $0x18] sm:$0xf]
    %v70 = vld [vmem:[#allocation5 + $0x1c] sm:$0xf]
    %v71 = vld [vmem:[#allocation5 + $0x20] sm:$0xf]
    %v72 = vld [vmem:[#allocation5 + $0x24] sm:$0xf]
    %v73 = vld [vmem:[#allocation5 + $0x28] sm:$0xf]
    %v74 = vld [vmem:[#allocation5 + $0x2c] sm:$0xf]
    %v75 = vld [vmem:[#allocation5 + $0x30] sm:$0xf]
    %v76 = vld [vmem:[#allocation5 + $0x34] sm:$0xf]
    %v77 = vld [vmem:[#allocation5 + $0x38] sm:$0xf]
    %v78 = vld [vmem:[#allocation5 + $0x3c] sm:$0xf]
    %v79 = vld [vmem:[%s2] sm:$0x1]
    %v81 = vlaneseq
    %v82 = vshrl.u32 %v81, 7
    %v83 = vsub.s32 0, %v82
    %v84 = vrot.slane %v79, %v83
    %v102 = vunpack.c.l.b16 %v63
    %v103 = vunpack.c.l.b16 %v64
    %v104 = vunpack.c.l.b16 %v65
    %v105 = vunpack.c.l.b16 %v66
    %v106 = vunpack.c.l.b16 %v67
    %v107 = vunpack.c.l.b16 %v68
    %v108 = vunpack.c.l.b16 %v69
    %v109 = vunpack.c.l.b16 %v70
    %v110 = vunpack.c.l.b16 %v71
    %v111 = vunpack.c.l.b16 %v72
    %v112 = vunpack.c.l.b16 %v73
    %v113 = vunpack.c.l.b16 %v74
    %v114 = vunpack.c.l.b16 %v75
    %v115 = vunpack.c.l.b16 %v76
    %v116 = vunpack.c.l.b16 %v77
    %v117 = vunpack.c.l.b16 %v78
    %v118 = vpack.c.b16 %v103, %v102
    %v119 = vpack.c.b16 %v105, %v104
    %v120 = vpack.c.b16 %v107, %v106
    %v121 = vpack.c.b16 %v109, %v108
    %v122 = vpack.c.b16 %v111, %v110
    %v123 = vpack.c.b16 %v113, %v112
    %v124 = vpack.c.b16 %v115, %v114
    %v125 = vpack.c.b16 %v117, %v116
    %134 = vmatprep.subr.bf16.mxu0 0
    %135 = vmatpush1.bf16.msra.mxu0 %v118
    %136 = vmatprep.subr.bf16.mxu0 0
    %137 = vmatpush1.bf16.msra.mxu0 %v119
    %138 = vmatprep.subr.bf16.mxu0 0
    %139 = vmatpush1.bf16.msra.mxu0 %v120
    %140 = vmatprep.subr.bf16.mxu0 0
    %141 = vmatpush1.bf16.msra.mxu0 %v121
    %142 = vmatprep.subr.bf16.mxu0 0
    %143 = vmatpush1.bf16.msra.mxu0 %v122
    %144 = vmatprep.subr.bf16.mxu0 0
    %145 = vmatpush1.bf16.msra.mxu0 %v123
    %146 = vmatprep.subr.bf16.mxu0 0
    %147 = vmatpush1.bf16.msra.mxu0 %v124
    %148 = vmatprep.subr.bf16.mxu0 0
    %149 = vmatpush1.bf16.msra.mxu0 %v125
    %150 = vmatprep.subr.bf16.mxu0 0
    %151 = vmatpush1.bf16.msra.mxu0 0
    %152 = vmatprep.subr.bf16.mxu0 0
    %153 = vmatpush1.bf16.msra.mxu0 0
    %154 = vmatprep.subr.bf16.mxu0 0
    %155 = vmatpush1.bf16.msra.mxu0 0
    %156 = vmatprep.subr.bf16.mxu0 0
    %157 = vmatpush1.bf16.msra.mxu0 0
    %158 = vmatprep.subr.bf16.mxu0 0
    %159 = vmatpush1.bf16.msra.mxu0 0
    %160 = vmatprep.subr.bf16.mxu0 0
    %161 = vmatpush1.bf16.msra.mxu0 0
    %162 = vmatprep.subr.bf16.mxu0 0
    %163 = vmatpush1.bf16.msra.mxu0 0
    %164 = vmatprep.subr.bf16.mxu0 0
    %165 = vmatpush1.bf16.msra.mxu0 0
    %166 = vmatprep.mubr.bf16.mxu0 0
    %167 = vmatmul.mubr.bf16.gmra.mrb[0].mxu0 %v62
    %v168 = vpop.f32.mrb[0].mxu0
    %v169 = vadd.f32 %v84, %v168
    %v170 = vpop.f32.mrb[0].mxu0
    %v171 = vpop.f32.mrb[0].mxu0
    %v172 = vpop.f32.mrb[0].mxu0
    %173 = vdwg.mxu0
    %v174 = vmax.f32 %v169, 0.0
    %v175 = vpack.c.bf16 %v174, %v174
    %s176 = scalar_lea.vmem [#allocation5], 64
    %v177 = vld [vmem:[%s176] sm:$0xf]
    %v178 = vld [vmem:[%s176 + $0x4] sm:$0xf]
    %v179 = vld [vmem:[%s176 + $0x8] sm:$0xf]
    %v180 = vld [vmem:[%s176 + $0xc] sm:$0xf]
    %v181 = vld [vmem:[%s176 + $0x10] sm:$0xf]
    %v182 = vld [vmem:[%s176 + $0x14] sm:$0xf]
    %v183 = vld [vmem:[%s176 + $0x18] sm:$0xf]
    %v184 = vld [vmem:[%s176 + $0x1c] sm:$0xf]
    %v185 = vld [vmem:[%s176 + $0x20] sm:$0xf]
    %v186 = vld [vmem:[%s176 + $0x24] sm:$0xf]
    %v187 = vld [vmem:[%s176 + $0x28] sm:$0xf]
    %v188 = vld [vmem:[%s176 + $0x2c] sm:$0xf]
    %v189 = vld [vmem:[%s176 + $0x30] sm:$0xf]
    %v190 = vld [vmem:[%s176 + $0x34] sm:$0xf]
    %v191 = vld [vmem:[%s176 + $0x38] sm:$0xf]
    %v192 = vld [vmem:[%s176 + $0x3c] sm:$0xf]
    %s193 = scalar_lea.vmem %s2, 1
    %v194 = vld [vmem:[%s193] sm:$0x1]
    %v196 = vlaneseq
    %v197 = vshrl.u32 %v196, 7
    %v198 = vsub.s32 0, %v197
    %v199 = vrot.slane %v194, %v198
    %v217 = vunpack.c.l.b16 %v177
    %v218 = vunpack.c.l.b16 %v178
    %v219 = vunpack.c.l.b16 %v179
    %v220 = vunpack.c.l.b16 %v180
    %v221 = vunpack.c.l.b16 %v181
    %v222 = vunpack.c.l.b16 %v182
    %v223 = vunpack.c.l.b16 %v183
    %v224 = vunpack.c.l.b16 %v184
    %v225 = vunpack.c.l.b16 %v185
    %v226 = vunpack.c.l.b16 %v186
    %v227 = vunpack.c.l.b16 %v187
    %v228 = vunpack.c.l.b16 %v188
    %v229 = vunpack.c.l.b16 %v189
    %v230 = vunpack.c.l.b16 %v190
    %v231 = vunpack.c.l.b16 %v191
    %v232 = vunpack.c.l.b16 %v192
    %v233 = vpack.c.b16 %v218, %v217
    %v234 = vpack.c.b16 %v220, %v219
    %v235 = vpack.c.b16 %v222, %v221
    %v236 = vpack.c.b16 %v224, %v223
    %v237 = vpack.c.b16 %v226, %v225
    %v238 = vpack.c.b16 %v228, %v227
    %v239 = vpack.c.b16 %v230, %v229
    %v240 = vpack.c.b16 %v232, %v231
    %249 = vmatprep.subr.bf16.mxu0 0
    %250 = vmatpush1.bf16.msra.mxu0 %v233
    %251 = vmatprep.subr.bf16.mxu0 0
    %252 = vmatpush1.bf16.msra.mxu0 %v234
    %253 = vmatprep.subr.bf16.mxu0 0
    %254 = vmatpush1.bf16.msra.mxu0 %v235
    %255 = vmatprep.subr.bf16.mxu0 0
    %256 = vmatpush1.bf16.msra.mxu0 %v236
    %257 = vmatprep.subr.bf16.mxu0 0
    %258 = vmatpush1.bf16.msra.mxu0 %v237
    %259 = vmatprep.subr.bf16.mxu0 0
    %260 = vmatpush1.bf16.msra.mxu0 %v238
    %261 = vmatprep.subr.bf16.mxu0 0
    %262 = vmatpush1.bf16.msra.mxu0 %v239
    %263 = vmatprep.subr.bf16.mxu0 0
    %264 = vmatpush1.bf16.msra.mxu0 %v240
    %265 = vmatprep.subr.bf16.mxu0 0
    %266 = vmatpush1.bf16.msra.mxu0 0
    %267 = vmatprep.subr.bf16.mxu0 0
    %268 = vmatpush1.bf16.msra.mxu0 0
    %269 = vmatprep.subr.bf16.mxu0 0
    %270 = vmatpush1.bf16.msra.mxu0 0
    %271 = vmatprep.subr.bf16.mxu0 0
    %272 = vmatpush1.bf16.msra.mxu0 0
    %273 = vmatprep.subr.bf16.mxu0 0
    %274 = vmatpush1.bf16.msra.mxu0 0
    %275 = vmatprep.subr.bf16.mxu0 0
    %276 = vmatpush1.bf16.msra.mxu0 0
    %277 = vmatprep.subr.bf16.mxu0 0
    %278 = vmatpush1.bf16.msra.mxu0 0
    %279 = vmatprep.subr.bf16.mxu0 0
    %280 = vmatpush1.bf16.msra.mxu0 0
    %281 = vmatprep.mubr.bf16.mxu0 0
    %282 = vmatmul.mubr.bf16.gmra.mrb[0].mxu0 %v175
    %v283 = vpop.f32.mrb[0].mxu0
    %v284 = vadd.f32 %v199, %v283
    %v285 = vpop.f32.mrb[0].mxu0
    %v286 = vpop.f32.mrb[0].mxu0
    %v287 = vpop.f32.mrb[0].mxu0
    %288 = vdwg.mxu0
    %v289 = vmax.f32 %v284, 0.0
    %v290 = vpack.c.bf16 %v289, %v289
    %v291 = vld [vmem:[#allocation7] sm:$0xf]
    %v292 = vld [vmem:[#allocation7 + $0x4] sm:$0xf]
    %v293 = vld [vmem:[#allocation7 + $0x8] sm:$0xf]
    %v294 = vld [vmem:[#allocation7 + $0xc] sm:$0xf]
    %v295 = vld [vmem:[#allocation7 + $0x10] sm:$0xf]
    %v296 = vld [vmem:[#allocation7 + $0x14] sm:$0xf]
    %v297 = vld [vmem:[#allocation7 + $0x18] sm:$0xf]
    %v298 = vld [vmem:[#allocation7 + $0x1c] sm:$0xf]
    %v299 = vld [vmem:[#allocation7 + $0x20] sm:$0xf]
    %v300 = vld [vmem:[#allocation7 + $0x24] sm:$0xf]
    %v301 = vld [vmem:[#allocation7 + $0x28] sm:$0xf]
    %v302 = vld [vmem:[#allocation7 + $0x2c] sm:$0xf]
    %v303 = vld [vmem:[#allocation7 + $0x30] sm:$0xf]
    %v304 = vld [vmem:[#allocation7 + $0x34] sm:$0xf]
    %v305 = vld [vmem:[#allocation7 + $0x38] sm:$0xf]
    %v306 = vld [vmem:[#allocation7 + $0x3c] sm:$0xf]
    %v307 = vld [vmem:[%s4] sm:$0x1]
    %v309 = vlaneseq
    %v310 = vshrl.u32 %v309, 7
    %v311 = vsub.s32 0, %v310
    %v312 = vrot.slane %v307, %v311
    %v330 = vunpack.c.l.b16 %v291
    %v331 = vunpack.c.l.b16 %v292
    %v332 = vunpack.c.l.b16 %v293
    %v333 = vunpack.c.l.b16 %v294
    %v334 = vunpack.c.l.b16 %v295
    %v335 = vunpack.c.l.b16 %v296
    %v336 = vunpack.c.l.b16 %v297
    %v337 = vunpack.c.l.b16 %v298
    %v338 = vunpack.c.l.b16 %v299
    %v339 = vunpack.c.l.b16 %v300
    %v340 = vunpack.c.l.b16 %v301
    %v341 = vunpack.c.l.b16 %v302
    %v342 = vunpack.c.l.b16 %v303
    %v343 = vunpack.c.l.b16 %v304
    %v344 = vunpack.c.l.b16 %v305
    %v345 = vunpack.c.l.b16 %v306
    %v346 = vpack.c.b16 %v331, %v330
    %v347 = vpack.c.b16 %v333, %v332
    %v348 = vpack.c.b16 %v335, %v334
    %v349 = vpack.c.b16 %v337, %v336
    %v350 = vpack.c.b16 %v339, %v338
    %v351 = vpack.c.b16 %v341, %v340
    %v352 = vpack.c.b16 %v343, %v342
    %v353 = vpack.c.b16 %v345, %v344
    %362 = vmatprep.subr.bf16.mxu0 0
    %363 = vmatpush1.bf16.msra.mxu0 %v346
    %364 = vmatprep.subr.bf16.mxu0 0
    %365 = vmatpush1.bf16.msra.mxu0 %v347
    %366 = vmatprep.subr.bf16.mxu0 0
    %367 = vmatpush1.bf16.msra.mxu0 %v348
    %368 = vmatprep.subr.bf16.mxu0 0
    %369 = vmatpush1.bf16.msra.mxu0 %v349
    %370 = vmatprep.subr.bf16.mxu0 0
    %371 = vmatpush1.bf16.msra.mxu0 %v350
    %372 = vmatprep.subr.bf16.mxu0 0
    %373 = vmatpush1.bf16.msra.mxu0 %v351
    %374 = vmatprep.subr.bf16.mxu0 0
    %375 = vmatpush1.bf16.msra.mxu0 %v352
    %376 = vmatprep.subr.bf16.mxu0 0
    %377 = vmatpush1.bf16.msra.mxu0 %v353
    %378 = vmatprep.subr.bf16.mxu0 0
    %379 = vmatpush1.bf16.msra.mxu0 0
    %380 = vmatprep.subr.bf16.mxu0 0
    %381 = vmatpush1.bf16.msra.mxu0 0
    %382 = vmatprep.subr.bf16.mxu0 0
    %383 = vmatpush1.bf16.msra.mxu0 0
    %384 = vmatprep.subr.bf16.mxu0 0
    %385 = vmatpush1.bf16.msra.mxu0 0
    %386 = vmatprep.subr.bf16.mxu0 0
    %387 = vmatpush1.bf16.msra.mxu0 0
    %388 = vmatprep.subr.bf16.mxu0 0
    %389 = vmatpush1.bf16.msra.mxu0 0
    %390 = vmatprep.subr.bf16.mxu0 0
    %391 = vmatpush1.bf16.msra.mxu0 0
    %392 = vmatprep.subr.bf16.mxu0 0
    %393 = vmatpush1.bf16.msra.mxu0 0
    %394 = vmatprep.mubr.bf16.mxu0 0
    %395 = vmatmul.mubr.bf16.gmra.mrb[0].mxu0 %v290
    %v396 = vpop.f32.mrb[0].mxu0
    %v397 = vadd.f32 %v312, %v396
    %v398 = vpop.f32.mrb[0].mxu0
    %v399 = vpop.f32.mrb[0].mxu0
    %v400 = vpop.f32.mrb[0].mxu0
    %401 = vdwg.mxu0
    %402 = vst [vmem:[#allocation8] sm:$0xff] %v397
    // Predicated region
    $region34: #{tpu_custom_call.1} parent=1 // pred_check
      _
    $region35: #{tpu_custom_call.1} parent=1 // pred_check_branch
      %404 = sbr.rel (0) target = $region37
    $region36: #{tpu_custom_call.1} parent=1 // pred_region
      %s406 = ssub.s32 128, 128
      %407 = vsyncadd [#allocation4], %s406
      %s409 = sshll.u32 [#allocation8], 4
      %s410 = int_to_ptr.vmem [resolvable:$true] %s409
      %412 = dma.vmem_to_hbm [thread:$0]  %s410, 128, %s5, [#allocation4]
    $region37: #{tpu_custom_call.1} parent=1 // pred_fallthru
      _
    // Predicated region
    $region38: #{tpu_custom_call.1} parent=1 // pred_check
      _
    $region39: #{tpu_custom_call.1} parent=1 // pred_check_branch
      %414 = sbr.rel (0) target = $region41
    $region40: #{tpu_custom_call.1} parent=1 // pred_region
      %415 = dma.done [#allocation4], 128
    $region41: #{tpu_custom_call.1} parent=1 // pred_fallthru
      _
    %416 = vsyncpa [#allocation3], 1
    %417 = vsyncpa [#allocation6], 1
    %418 = vsyncpa [#allocation4], 1

</llo_original>
